<compile_context>
chip_gen: v7x
topology: tpu7x:2x2x1
jax: 0.10.0
libtpu: 0.0.40
codegen_flags: <defaults>
</compile_context>

<pallas_src>
import jax
import jax.numpy as jnp
from jax.experimental import pallas as pl
from jax.experimental.pallas import tpu as pltpu


def _elementwise_kernel(x_ref, o_ref):
    # ((x + 2) - 1) * 3 / 2  ==  x * 1.5 + 1.5
    x = x_ref[...]
    o_ref[...] = x * 1.5 + 1.5


def pt_module_forward(x):
    """Elementwise ((x + 2) - 1) * 3 / 2 via a Pallas TPU kernel."""
    orig_shape = x.shape
    dtype = x.dtype
    n = x.size
    itemsize = jnp.dtype(dtype).itemsize

    # Pick the widest lane-aligned column count that divides n exactly, so the
    # 2D view is a metadata-only reshape (no HBM pad/unpad copies).
    cols = None
    for c in (8192, 4096, 2048, 1024, 512, 256, 128):
        if n % c == 0:
            cols = c
            break

    if cols is None:
        # Rare ragged path (flat size not a multiple of 128): pad minimally.
        # TODO(synk): avoid this copy with a manual-DMA 1D kernel if it matters.
        cols = 128
        n_pad = ((n + cols - 1) // cols) * cols
        x_flat = jnp.concatenate(
            [jnp.ravel(x), jnp.zeros((n_pad - n,), dtype=dtype)]
        )
        x2d = x_flat.reshape(n_pad // cols, cols)
        padded = True
    else:
        x2d = jnp.ravel(x).reshape(n // cols, cols)
        padded = False

    rows = x2d.shape[0]

    # ~4 MiB blocks: 4 pipelined buffers (in+out, double-buffered) = ~16 MiB,
    # safe within v7x's 32 MiB scoped VMEM and comfortable on v5e/v6e.
    target_block_bytes = 4 * 1024 * 1024
    sublane_mult = 8 * max(1, 4 // itemsize)  # 8 f32 / 16 bf16 / 32 int8
    block_rows = target_block_bytes // (cols * itemsize)
    block_rows = max(sublane_mult, (block_rows // sublane_mult) * sublane_mult)
    if block_rows >= rows:
        block_rows = rows  # single full-extent block is always a legal shape

    grid = (pl.cdiv(rows, block_rows),)

    out2d = pl.pallas_call(
        _elementwise_kernel,
        out_shape=jax.ShapeDtypeStruct((rows, cols), dtype),
        grid=grid,
        in_specs=[pl.BlockSpec((block_rows, cols), lambda i: (i, 0))],
        out_specs=pl.BlockSpec((block_rows, cols), lambda i: (i, 0)),
        compiler_params=pltpu.CompilerParams(
            dimension_semantics=("parallel",),
            vmem_limit_bytes=32 * 1024 * 1024,
        ),
    )(x2d)

    if padded:
        return out2d.reshape(-1)[:n].reshape(orig_shape)
    return out2d.reshape(orig_shape)


if __name__ == "__main__":
    key = jax.random.PRNGKey(0)
    # Small NCHW-like input consistent with the generic torch forward.
    x = jax.random.normal(key, (2, 4, 16, 16), dtype=jnp.float32)

    out = pt_module_forward(x)
    jax.block_until_ready(out)

    # Reference check (pure JAX, original op chain).
    ref = ((x + 2.0) - 1.0) * 3.0 / 2.0
    assert out.shape == x.shape and out.dtype == x.dtype
    assert jnp.allclose(out, ref, atol=1e-5, rtol=1e-5), "mismatch vs reference"

    print("KERNEL_OK")
</pallas_src>

<mosaic_0001>
module attributes {stable_mosaic.version = 11 : i64} {
  func.func @_elementwise_kernel(%arg0: i32, %arg1: memref<1x2048xf32, #tpu.memory_space<vmem>>, %arg2: memref<1x2048xf32, #tpu.memory_space<vmem>>) attributes {dimension_semantics = [#tpu.dimension_semantics<parallel>], iteration_bounds = array<i64: 1>, scalar_prefetch = 0 : i64, scratch_operands = 0 : i64, tpu.core_type = #tpu.core_type<tc>, window_params = [{transform_indices = @transform_0, window_bounds = array<i64: 1, 2048>}, {transform_indices = @transform_1, window_bounds = array<i64: 1, 2048>}]} {
    %c0 = arith.constant 0 : index
    %c0_0 = arith.constant 0 : index
    %0 = vector.load %arg1[%c0, %c0_0] : memref<1x2048xf32, #tpu.memory_space<vmem>>, vector<1x2048xf32>
    %cst = arith.constant 1.500000e+00 : f32
    %1 = vector.broadcast %cst : f32 to vector<1x2048xf32>
    %2 = arith.mulf %0, %1 : vector<1x2048xf32>
    %cst_1 = arith.constant 1.500000e+00 : f32
    %3 = vector.broadcast %cst_1 : f32 to vector<1x2048xf32>
    %4 = arith.addf %2, %3 : vector<1x2048xf32>
    %c0_2 = arith.constant 0 : index
    %c0_3 = arith.constant 0 : index
    %5 = vector.load %arg2[%c0_2, %c0_3] : memref<1x2048xf32, #tpu.memory_space<vmem>>, vector<1x2048xf32>
    tpu.vector_store %arg2[%c0_2, %c0_3], %4 {strides = array<i32>} : memref<1x2048xf32, #tpu.memory_space<vmem>>, vector<1x2048xf32>,
    return
  }
  func.func @transform_0(%arg0: i32) -> (i32, i32) {
    %c0_i32 = arith.constant 0 : i32
    %c0_i32_0 = arith.constant 0 : i32
    return %arg0, %c0_i32 : i32, i32
  }
  func.func @transform_1(%arg0: i32) -> (i32, i32) {
    %c0_i32 = arith.constant 0 : i32
    %c0_i32_0 = arith.constant 0 : i32
    return %arg0, %c0_i32 : i32, i32
  }
}

</mosaic_0001>

<llo_original>
// kernel: tpu_custom_call.1
$region0: #{tpu_custom_call.1}
  #allocation0 [shape = 'u32[]', space=smem, size = 0x4, offset = 0x4, fixed_abs, tag = 'smem constant byte address 0x4 - core index']
  #allocation1 [shape = 'u32[144,128]{1,0:T(1,128)}', space=vmem, size = 0x12000, scoped, tag = 'internal scratch']
  %s0 = inlined_call_operand.hbm [shape: f32[1,2048], index: 0, kind: input, shape index: {}]
  %s1 = inlined_call_operand.hbm [shape: f32[1,2048], index: 1, kind: output, shape index: {}]
  %s2 = sld [smem:[#allocation0]]
  $region18: #{tpu_custom_call.1} parent=0
    _
  %s4 = ssub.s32 1, %s2
  %s5 = scalar_select 0, %s4, %s2
  $region1: #{tpu_custom_call.1} parent=0
    #allocation2 [shape = 'u8[8192]{0}', space=vmem, size = 0x2000, scoped, tag = 'input window, operand 0, single buffered']
    #allocation3 [shape = 's32[1]{0}', space=sflag, size = 0x4, scoped, tag = 'scoped memory for tpu_custom_call.1']
    #allocation4 [shape = 's32[1]{0}', space=sflag, size = 0x4, scoped, tag = 'scoped memory for tpu_custom_call.1']
    #allocation5 [shape = 'u8[8192]{0}', space=vmem, size = 0x2000, scoped, tag = 'output window, operand 0, single buffered']
    %6 = vsyncpa [#allocation3], 0
    %7 = vsyncpa [#allocation4], 0
    // Predicated region
    $region2: #{tpu_custom_call.1} parent=1 // pred_check
      _
    $region3: #{tpu_custom_call.1} parent=1 // pred_check_branch
      %9 = sbr.rel (0) target = $region5
    $region4: #{tpu_custom_call.1} parent=1 // pred_region
      %s11 = ssub.s32 256, 256
      %12 = vsyncadd [#allocation3], %s11
      %s14 = sshll.u32 [#allocation2], 4
      %s15 = int_to_ptr.vmem [resolvable:$true] %s14
      %17 = dma.hbm_to_vmem [thread:$0]  %s0, 256, %s15, [#allocation3]
    $region5: #{tpu_custom_call.1} parent=1 // pred_fallthru
      _
    // Predicated region
    $region6: #{tpu_custom_call.1} parent=1 // pred_check
      _
    $region7: #{tpu_custom_call.1} parent=1 // pred_check_branch
      %19 = sbr.rel (0) target = $region9
    $region8: #{tpu_custom_call.1} parent=1 // pred_region
      %20 = dma.done [#allocation3], 256
    $region9: #{tpu_custom_call.1} parent=1 // pred_fallthru
      _
    %v21 = vld [vmem:[#allocation2] sm:$0xff]
    %v22 = vld [vmem:[#allocation2 + $0x8] sm:$0xff]
    %v23 = vmul.f32 %v21, 1.5
    %v24 = vmul.f32 %v22, 1.5
    %v25 = vadd.f32 %v23, 1.5
    %v26 = vadd.f32 %v24, 1.5
    %27 = vst [vmem:[#allocation5] sm:$0xff] %v25
    %28 = vst [vmem:[#allocation5 + $0x8] sm:$0xff] %v26
    // Predicated region
    $region10: #{tpu_custom_call.1} parent=1 // pred_check
      _
    $region11: #{tpu_custom_call.1} parent=1 // pred_check_branch
      %30 = sbr.rel (0) target = $region13
    $region12: #{tpu_custom_call.1} parent=1 // pred_region
      %s32 = ssub.s32 256, 256
      %33 = vsyncadd [#allocation4], %s32
      %s35 = sshll.u32 [#allocation5], 4
      %s36 = int_to_ptr.vmem [resolvable:$true] %s35
      %38 = dma.vmem_to_hbm [thread:$0]  %s36, 256, %s1, [#allocation4]
    $region13: #{tpu_custom_call.1} parent=1 // pred_fallthru
      _
    // Predicated region
    $region14: #{tpu_custom_call.1} parent=1 // pred_check
      _
    $region15: #{tpu_custom_call.1} parent=1 // pred_check_branch
      %40 = sbr.rel (0) target = $region17
    $region16: #{tpu_custom_call.1} parent=1 // pred_region
      %41 = dma.done [#allocation4], 256
    $region17: #{tpu_custom_call.1} parent=1 // pred_fallthru
      _
    %42 = vsyncpa [#allocation3], 1
    %43 = vsyncpa [#allocation4], 1

</llo_original>
